<compile_context>
chip_gen: v6e
topology: v6e:2x2x1
jax: 0.10.0
libtpu: 0.0.40
codegen_flags: <defaults>
</compile_context>

<pallas_src>
import jax
import jax.numpy as jnp
from jax.experimental import pallas as pl
from jax.experimental.pallas import tpu as pltpu


# ----------------------------------------------------------------------------
# Kernel body: identity copy of the current tile (lane-dense).
# ----------------------------------------------------------------------------
def _copy_kernel(x_ref, o_ref):
    o_ref[...] = x_ref[...]


def _squeezed_shape(shape, dim):
    """Compute torch.squeeze output shape (dim may be None, int, or tuple)."""
    nd = len(shape)
    if dim is None:
        return tuple(s for s in shape if s != 1)
    if isinstance(dim, (tuple, list)):
        dims = {(d if d >= 0 else d + nd) for d in dim}
        return tuple(s for i, s in enumerate(shape)
                     if not (i in dims and s == 1))
    d = dim if dim >= 0 else dim + nd
    if shape[d] == 1:
        return shape[:d] + shape[d + 1:]
    return shape


_LANES = 128                      # minimum lane-dense column width
_TARGET_TILE_BYTES = 2 << 20      # ~2 MiB/tile: 4 live buffers = 8 MiB,
                                  # safe on v5e (16 MiB scoped default),
                                  # big enough to hide ~0.35 us/step on v7x.
_MAX_SINGLE_BLOCK_BYTES = 2 << 20 # below this, skip the grid entirely.


def squeeze_pallas(x, dim=None, force_kernel=False):
    """Equivalent of torch.squeeze(x, dim).

    Default path is a zero-cost metadata reshape (squeeze moves no data).
    If ``force_kernel=True`` and the size permits, the data is routed through
    a lane-dense Pallas identity-copy kernel instead.
    """
    out_shape = _squeezed_shape(x.shape, dim)

    if not force_kernel:
        # Squeeze is metadata-only: bitcast reshape, zero HBM traffic.
        return jnp.reshape(x, out_shape)

    total = x.size
    if total == 0 or x.ndim == 0 or total % _LANES != 0:
        # Zero-size / scalar / non-128-multiple sizes: launching a copy kernel
        # here would need masked partial stores or an oversized VMEM block,
        # so use the free reshape (exact same values, no data movement).
        return jnp.reshape(x, out_shape)

    itemsize = jnp.dtype(x.dtype).itemsize

    # Widest lane-dense factoring that divides the total element count.
    cols = _LANES
    for c in (1024, 512, 256):
        if total % c == 0:
            cols = c
            break
    rows = total // cols
    x2d = x.reshape(rows, cols)

    total_bytes = total * itemsize

    if total_bytes <= _MAX_SINGLE_BLOCK_BYTES:
        # Small tensor: single whole-array VMEM block, no grid overhead.
        y2d = pl.pallas_call(
            _copy_kernel,
            out_shape=jax.ShapeDtypeStruct((rows, cols), x.dtype),
            in_specs=[pl.BlockSpec(memory_space=pltpu.MemorySpace.VMEM)],
            out_specs=pl.BlockSpec(memory_space=pltpu.MemorySpace.VMEM),
        )(x2d)
    else:
        # Row-tiled 1-D grid -> auto double-buffered HBM<->VMEM pipeline.
        tile_r = (_TARGET_TILE_BYTES // (cols * itemsize)) // 8 * 8
        tile_r = max(8, min(tile_r, rows))
        grid = (pl.cdiv(rows, tile_r),)
        y2d = pl.pallas_call(
            _copy_kernel,
            out_shape=jax.ShapeDtypeStruct((rows, cols), x.dtype),
            grid=grid,
            in_specs=[pl.BlockSpec((tile_r, cols), lambda i: (i, 0))],
            out_specs=pl.BlockSpec((tile_r, cols), lambda i: (i, 0)),
            compiler_params=pltpu.CompilerParams(
                dimension_semantics=("parallel",)),
        )(x2d)

    # The squeeze itself is the free reshape of the copied buffer.
    return y2d.reshape(out_shape)


if __name__ == "__main__":
    key = jax.random.PRNGKey(0)

    # Squeeze(dim=1): NCHW input with a singleton channel axis (default path).
    x = jax.random.normal(key, (2, 1, 16, 16), dtype=jnp.float32)
    y = squeeze_pallas(x, dim=1)
    jax.block_until_ready(y)
    assert y.shape == (2, 16, 16), y.shape
    assert jnp.allclose(y, jnp.squeeze(x, axis=1)), "value mismatch (dim=1)"

    # Same input through the Pallas copy kernel (single whole-array block).
    yk = squeeze_pallas(x, dim=1, force_kernel=True)
    jax.block_until_ready(yk)
    assert yk.shape == (2, 16, 16), yk.shape
    assert jnp.allclose(yk, jnp.squeeze(x, axis=1)), "value mismatch (kernel)"

    # Squeeze(dim=None): remove all size-1 dims; total (32) is not a multiple
    # of 128, exercising the safe metadata-reshape fallback of the kernel path.
    x2 = jax.random.normal(jax.random.PRNGKey(1), (2, 1, 16, 1),
                           dtype=jnp.float32)
    y2 = squeeze_pallas(x2, dim=None, force_kernel=True)
    jax.block_until_ready(y2)
    assert y2.shape == (2, 16), y2.shape
    assert jnp.allclose(y2, jnp.squeeze(x2)), "value mismatch (dim=None)"

    # Moderate input to exercise the lane-dense, row-tiled grid path.
    x3 = jax.random.normal(jax.random.PRNGKey(2), (8, 1, 256, 512),
                           dtype=jnp.float32)
    y3 = squeeze_pallas(x3, dim=1, force_kernel=True)
    jax.block_until_ready(y3)
    assert y3.shape == (8, 256, 512), y3.shape
    assert jnp.allclose(y3, jnp.squeeze(x3, axis=1)), "value mismatch (grid)"

    # torch semantics: squeezing a non-size-1 dim is a no-op.
    y4 = squeeze_pallas(x, dim=0)
    jax.block_until_ready(y4)
    assert y4.shape == x.shape, y4.shape
    assert jnp.allclose(y4, x), "value mismatch (no-op dim)"

    print("KERNEL_OK")
</pallas_src>

<mosaic_0001>
module attributes {stable_mosaic.version = 11 : i64} {
  func.func @_copy_kernel(%arg0: memref<1x512xf32, #tpu.memory_space<vmem>>, %arg1: memref<1x512xf32, #tpu.memory_space<vmem>>) attributes {dimension_semantics = [], scalar_prefetch = 0 : i64, scratch_operands = 0 : i64, tpu.core_type = #tpu.core_type<tc>} {
    %c0 = arith.constant 0 : index
    %c0_0 = arith.constant 0 : index
    %0 = vector.load %arg0[%c0, %c0_0] : memref<1x512xf32, #tpu.memory_space<vmem>>, vector<1x512xf32>
    %c0_1 = arith.constant 0 : index
    %c0_2 = arith.constant 0 : index
    %1 = vector.load %arg1[%c0_1, %c0_2] : memref<1x512xf32, #tpu.memory_space<vmem>>, vector<1x512xf32>
    tpu.vector_store %arg1[%c0_1, %c0_2], %0 {strides = array<i32>} : memref<1x512xf32, #tpu.memory_space<vmem>>, vector<1x512xf32>,
    return
  }
}

</mosaic_0001>

<llo_original>
// kernel: tpu_custom_call.1
$region0: #{tpu_custom_call.1}
  #allocation0 [shape = 'u32[]', space=smem, size = 0x4, offset = 0x4, fixed_abs, tag = 'smem constant byte address 0x4 - core index']
  #allocation1 [shape = 'u32[144,128]{1,0:T(1,128)}', space=vmem, size = 0x12000, scoped, tag = 'internal scratch']
  %s0 = inlined_call_operand.hbm [shape: f32[1,512], index: 0, kind: input, shape index: {}]
  %s1 = inlined_call_operand.hbm [shape: f32[1,512], index: 1, kind: output, shape index: {}]
  %s2 = sld [smem:[#allocation0]]
  $region18: #{tpu_custom_call.1} parent=0
    _
  %s4 = ssub.s32 1, %s2
  %s5 = scalar_select 0, %s4, %s2
  $region1: #{tpu_custom_call.1} parent=0
    #allocation2 [shape = 'u8[2048]{0}', space=vmem, size = 0x800, scoped, tag = 'input window, operand 0, single buffered']
    #allocation3 [shape = 's32[1]{0}', space=sflag, size = 0x4, scoped, tag = 'scoped memory for tpu_custom_call.1']
    #allocation4 [shape = 's32[1]{0}', space=sflag, size = 0x4, scoped, tag = 'scoped memory for tpu_custom_call.1']
    #allocation5 [shape = 'u8[2048]{0}', space=vmem, size = 0x800, scoped, tag = 'output window, operand 0, single buffered']
    %6 = vsyncpa [#allocation3], 0
    %7 = vsyncpa [#allocation4], 0
    // Predicated region
    $region2: #{tpu_custom_call.1} parent=1 // pred_check
      _
    $region3: #{tpu_custom_call.1} parent=1 // pred_check_branch
      %9 = sbr.rel (0) target = $region5
    $region4: #{tpu_custom_call.1} parent=1 // pred_region
      %s11 = ssub.s32 64, 64
      %12 = vsyncadd [#allocation3], %s11
      %s14 = sshll.u32 [#allocation2], 4
      %s15 = int_to_ptr.vmem [resolvable:$true] %s14
      %17 = dma.hbm_to_vmem [thread:$0]  %s0, 64, %s15, [#allocation3]
    $region5: #{tpu_custom_call.1} parent=1 // pred_fallthru
      _
    // Predicated region
    $region6: #{tpu_custom_call.1} parent=1 // pred_check
      _
    $region7: #{tpu_custom_call.1} parent=1 // pred_check_branch
      %19 = sbr.rel (0) target = $region9
    $region8: #{tpu_custom_call.1} parent=1 // pred_region
      %20 = dma.done [#allocation3], 64
    $region9: #{tpu_custom_call.1} parent=1 // pred_fallthru
      _
    %v21 = vld [vmem:[#allocation2] sm:$0xf]
    %v22 = vlaneseq
    %vm23 = vcmp.ge.s32.totalorder %v22, 0
    %vm24 = vcmp.lt.s32.totalorder %v22, 512
    %vm25 = vmand %vm23, %vm24
    %26 = vst.msk [vmem:[#allocation5] sm:$0xf] %vm25, %v21
    // Predicated region
    $region10: #{tpu_custom_call.1} parent=1 // pred_check
      _
    $region11: #{tpu_custom_call.1} parent=1 // pred_check_branch
      %28 = sbr.rel (0) target = $region13
    $region12: #{tpu_custom_call.1} parent=1 // pred_region
      %s30 = ssub.s32 64, 64
      %31 = vsyncadd [#allocation4], %s30
      %s33 = sshll.u32 [#allocation5], 4
      %s34 = int_to_ptr.vmem [resolvable:$true] %s33
      %36 = dma.vmem_to_hbm [thread:$0]  %s34, 64, %s1, [#allocation4]
    $region13: #{tpu_custom_call.1} parent=1 // pred_fallthru
      _
    // Predicated region
    $region14: #{tpu_custom_call.1} parent=1 // pred_check
      _
    $region15: #{tpu_custom_call.1} parent=1 // pred_check_branch
      %38 = sbr.rel (0) target = $region17
    $region16: #{tpu_custom_call.1} parent=1 // pred_region
      %39 = dma.done [#allocation4], 64
    $region17: #{tpu_custom_call.1} parent=1 // pred_fallthru
      _
    %40 = vsyncpa [#allocation3], 1
    %41 = vsyncpa [#allocation4], 1

</llo_original>
